<compile_context>
chip_gen: v6e
topology: v6e:2x2x1
jax: 0.10.0
libtpu: 0.0.40
codegen_flags: <defaults>
</compile_context>

<pallas_src>
import jax
import jax.numpy as jnp
from jax.experimental import pallas as pl
from jax.experimental.pallas import tpu as pltpu


def _round_up(x, m):
    return (x + m - 1) // m * m


def _pick_tm(B, block_b=512):
    # Aim for >= 2 grid steps whenever B > 8 so v7x's two TensorCores both get a tile;
    # keep the sublane dim a multiple of 8.
    tm = max(8, _round_up(pl.cdiv(max(B, 1), 2), 8))
    return min(block_b, tm)


def _rnn_kernel(x_ref, wih_ref, brnn_ref, wfc_ref, bfc_ref, o_ref):
    # RNN cell (seq_len == 1, h0 == 0): h = tanh(x @ W_ih^T + b_ih + b_hh).
    # One (TM,128)@(128,Hp) MXU pass; padded K rows / H lanes are zero so they add 0.
    h = jnp.tanh(
        jnp.dot(x_ref[...], wih_ref[...], preferred_element_type=jnp.float32)
        + brnn_ref[...]
    )                                                            # (TM, Hp)
    # FC (out_features == 1): VPU multiply + XLU lane reduction, kept off the MXU.
    o_ref[...] = jnp.sum(h * wfc_ref[...], axis=-1, keepdims=True) + bfc_ref[...]


def rnn_forward_pallas(user, item, user_tab, item_tab, w_ih_t, b_rnn, w_fc, b_fc,
                       *, block_b=512):
    """user/item: (B,) int indices. Weights pre-transposed and zero-padded on the host."""
    B = int(user.shape[0])
    E = int(user_tab.shape[1])
    Kp = int(w_ih_t.shape[0])      # padded input dim (2E -> 128)
    Hp = int(w_ih_t.shape[1])      # padded hidden dim (H -> 128)

    # Embedding gather + concat in XLA (per perf review): removes the in-kernel
    # scalar-gated gather loop entirely and keeps the tables out of VMEM/SMEM.
    ue = jnp.take(user_tab, user.astype(jnp.int32), axis=0)
    ie = jnp.take(item_tab, item.astype(jnp.int32), axis=0)
    x = jnp.concatenate([ue, ie], axis=1).astype(jnp.float32)    # (B, 2E)

    tm = _pick_tm(B, block_b)
    Bp = _round_up(max(B, tm), tm)
    # Lane-pad 2E -> Kp and row-pad B -> Bp so every block is a full unmasked (8,128) tile.
    x_p = jnp.zeros((Bp, Kp), jnp.float32).at[:B, : 2 * E].set(x)

    grid = (Bp // tm,)

    out = pl.pallas_call(
        _rnn_kernel,
        out_shape=jax.ShapeDtypeStruct((Bp, 1), jnp.float32),
        grid=grid,
        in_specs=[
            pl.BlockSpec((tm, Kp), lambda i: (i, 0)),    # x tile (pipelined over batch)
            pl.BlockSpec((Kp, Hp), lambda i: (0, 0)),    # W_ih^T (padded, stationary)
            pl.BlockSpec((1, Hp), lambda i: (0, 0)),     # b_ih + b_hh (padded row)
            pl.BlockSpec((1, Hp), lambda i: (0, 0)),     # W_fc row (padded)
            pl.BlockSpec((1, 1), lambda i: (0, 0)),      # b_fc
        ],
        out_specs=pl.BlockSpec((tm, 1), lambda i: (i, 0)),
        compiler_params=pltpu.CompilerParams(
            dimension_semantics=("parallel",),           # batch tiles shard across TCs
        ),
    )(x_p, w_ih_t, b_rnn, w_fc, b_fc)

    return out[:B, 0]                                    # .squeeze() -> (B,)


class RNNPallas:
    """Parameter container + forward mirroring the PyTorch RNN module."""

    def __init__(self, num_users, num_items, embedding_dim=20, hidden_dim=50, seed=0):
        k = jax.random.PRNGKey(seed)
        ks = jax.random.split(k, 7)
        E, H = embedding_dim, hidden_dim
        Kp = _round_up(2 * E, 128)           # lane-pad concatenated input dim
        Hp = _round_up(H, 128)               # lane-pad hidden dim
        self.embedding_dim = E
        self.hidden_dim = H
        self.in_pad = Kp
        self.hidden_pad = Hp

        # nn.Embedding default init: N(0, 1).  Tables never enter the Pallas kernel
        # (the gather runs as XLA jnp.take), so bf16 storage is an optional free DMA
        # win on v6e/v7x for large tables; kept f32 here.
        self.user_embedding = jax.random.normal(ks[0], (num_users, E), jnp.float32)
        self.item_embedding = jax.random.normal(ks[1], (num_items, E), jnp.float32)

        # nn.RNN default init: U(-1/sqrt(H), 1/sqrt(H))
        bound = 1.0 / (H ** 0.5)
        w_ih = jax.random.uniform(ks[2], (H, 2 * E), jnp.float32, -bound, bound)
        b_ih = jax.random.uniform(ks[3], (H,), jnp.float32, -bound, bound)
        b_hh = jax.random.uniform(ks[4], (H,), jnp.float32, -bound, bound)
        # W_hh is unused (seq_len == 1, h0 == 0) and therefore not materialized.
        self.w_ih_t = (
            jnp.zeros((Kp, Hp), jnp.float32).at[: 2 * E, :H].set(jnp.transpose(w_ih))
        )
        self.b_rnn = jnp.zeros((1, Hp), jnp.float32).at[:, :H].set(b_ih + b_hh)

        # nn.Linear(H, 1) default init: U(-1/sqrt(H), 1/sqrt(H)); stored as a zero-padded
        # (1, Hp) ROW so the FC is a VPU multiply + lane reduction in-kernel.
        w_fc = jax.random.uniform(ks[5], (1, H), jnp.float32, -bound, bound)
        b_fc = jax.random.uniform(ks[6], (1,), jnp.float32, -bound, bound)
        self.w_fc = jnp.zeros((1, Hp), jnp.float32).at[:, :H].set(w_fc)
        self.b_fc = b_fc.reshape(1, 1)

    def __call__(self, user, item):
        return rnn_forward_pallas(
            user, item,
            self.user_embedding, self.item_embedding,
            self.w_ih_t, self.b_rnn, self.w_fc, self.b_fc,
        )


if __name__ == "__main__":
    num_users, num_items = 100, 200
    B = 8
    model = RNNPallas(num_users, num_items, embedding_dim=20, hidden_dim=50, seed=0)

    key = jax.random.PRNGKey(0)
    ku, ki = jax.random.split(key)
    user = jax.random.randint(ku, (B,), 0, num_users, dtype=jnp.int32)
    item = jax.random.randint(ki, (B,), 0, num_items, dtype=jnp.int32)

    out = model(user, item)
    jax.block_until_ready(out)

    # Pure-JAX reference (uses the un-padded slices, also validating the zero padding).
    H = model.hidden_dim
    E = model.embedding_dim
    x = jnp.concatenate(
        [model.user_embedding[user], model.item_embedding[item]], axis=1
    )
    h = jnp.tanh(x @ model.w_ih_t[: 2 * E, :H] + model.b_rnn[:, :H])
    ref = h @ model.w_fc[0, :H] + model.b_fc[0, 0]

    assert out.shape == (B,)
    assert jnp.allclose(out, ref, atol=1e-5, rtol=1e-5)

    print("KERNEL_OK")
</pallas_src>

<mosaic_0001>
module attributes {stable_mosaic.version = 11 : i64} {
  func.func @_rnn_kernel(%arg0: i32, %arg1: memref<8x128xf32, #tpu.memory_space<vmem>>, %arg2: memref<128x128xf32, #tpu.memory_space<vmem>>, %arg3: memref<1x128xf32, #tpu.memory_space<vmem>>, %arg4: memref<1x128xf32, #tpu.memory_space<vmem>>, %arg5: memref<1x1xf32, #tpu.memory_space<vmem>>, %arg6: memref<8x1xf32, #tpu.memory_space<vmem>>) attributes {dimension_semantics = [#tpu.dimension_semantics<parallel>], iteration_bounds = array<i64: 1>, scalar_prefetch = 0 : i64, scratch_operands = 0 : i64, tpu.core_type = #tpu.core_type<tc>, window_params = [{transform_indices = @transform_0, window_bounds = array<i64: 8, 128>}, {pipeline_mode = #tpu.pipeline_mode<synchronous>, transform_indices = @transform_1, window_bounds = array<i64: 128, 128>}, {pipeline_mode = #tpu.pipeline_mode<synchronous>, transform_indices = @transform_2, window_bounds = array<i64: 1, 128>}, {pipeline_mode = #tpu.pipeline_mode<synchronous>, transform_indices = @transform_3, window_bounds = array<i64: 1, 128>}, {pipeline_mode = #tpu.pipeline_mode<synchronous>, transform_indices = @transform_4, window_bounds = array<i64: 1, 1>}, {transform_indices = @transform_5, window_bounds = array<i64: 8, 1>}]} {
    %c0 = arith.constant 0 : index
    %c0_0 = arith.constant 0 : index
    %0 = vector.load %arg1[%c0, %c0_0] : memref<8x128xf32, #tpu.memory_space<vmem>>, vector<8x128xf32>
    %c0_1 = arith.constant 0 : index
    %c0_2 = arith.constant 0 : index
    %1 = vector.load %arg2[%c0_1, %c0_2] : memref<128x128xf32, #tpu.memory_space<vmem>>, vector<128x128xf32>
    %cst = arith.constant dense<0.000000e+00> : vector<8x128xf32>
    %2 = tpu.matmul %0, %1, %cst {dimension_numbers = #tpu.dot_dimension_numbers<[1], [0], [0], [1], [0, 0, 1, 1], [], []>} : vector<8x128xf32>, vector<128x128xf32>, vector<8x128xf32> -> vector<8x128xf32>
    %c0_3 = arith.constant 0 : index
    %c0_4 = arith.constant 0 : index
    %3 = vector.load %arg3[%c0_3, %c0_4] : memref<1x128xf32, #tpu.memory_space<vmem>>, vector<1x128xf32>
    %4 = vector.broadcast %3 : vector<1x128xf32> to vector<8x128xf32>
    %5 = arith.addf %2, %4 : vector<8x128xf32>
    %6 = math.tanh %5 : vector<8x128xf32>
    %c0_5 = arith.constant 0 : index
    %c0_6 = arith.constant 0 : index
    %7 = vector.load %arg4[%c0_5, %c0_6] : memref<1x128xf32, #tpu.memory_space<vmem>>, vector<1x128xf32>
    %8 = vector.broadcast %7 : vector<1x128xf32> to vector<8x128xf32>
    %9 = arith.mulf %6, %8 : vector<8x128xf32>
    %cst_7 = arith.constant dense<0.000000e+00> : vector<8xf32>
    %10 = vector.multi_reduction <add>, %9, %cst_7 [1] : vector<8x128xf32> to vector<8xf32>
    %11 = vector.shape_cast %10 : vector<8xf32> to vector<8x1xf32>
    %c0_8 = arith.constant 0 : index
    %c0_9 = arith.constant 0 : index
    %12 = vector.load %arg5[%c0_8, %c0_9] : memref<1x1xf32, #tpu.memory_space<vmem>>, vector<1x1xf32>
    %13 = vector.broadcast %12 : vector<1x1xf32> to vector<8x1xf32>
    %14 = arith.addf %11, %13 : vector<8x1xf32>
    %c0_10 = arith.constant 0 : index
    %c0_11 = arith.constant 0 : index
    %15 = vector.load %arg6[%c0_10, %c0_11] : memref<8x1xf32, #tpu.memory_space<vmem>>, vector<8x1xf32>
    tpu.vector_store %arg6[%c0_10, %c0_11], %14 {strides = array<i32>} : memref<8x1xf32, #tpu.memory_space<vmem>>, vector<8x1xf32>,
    return
  }
  func.func @transform_0(%arg0: i32) -> (i32, i32) {
    %c0_i32 = arith.constant 0 : i32
    %c0_i32_0 = arith.constant 0 : i32
    return %arg0, %c0_i32 : i32, i32
  }
  func.func @transform_1(%arg0: i32) -> (i32, i32) {
    %c0_i32 = arith.constant 0 : i32
    %c0_i32_0 = arith.constant 0 : i32
    %c0_i32_1 = arith.constant 0 : i32
    return %c0_i32, %c0_i32_0 : i32, i32
  }
  func.func @transform_2(%arg0: i32) -> (i32, i32) {
    %c0_i32 = arith.constant 0 : i32
    %c0_i32_0 = arith.constant 0 : i32
    %c0_i32_1 = arith.constant 0 : i32
    return %c0_i32, %c0_i32_0 : i32, i32
  }
  func.func @transform_3(%arg0: i32) -> (i32, i32) {
    %c0_i32 = arith.constant 0 : i32
    %c0_i32_0 = arith.constant 0 : i32
    %c0_i32_1 = arith.constant 0 : i32
    return %c0_i32, %c0_i32_0 : i32, i32
  }
  func.func @transform_4(%arg0: i32) -> (i32, i32) {
    %c0_i32 = arith.constant 0 : i32
    %c0_i32_0 = arith.constant 0 : i32
    %c0_i32_1 = arith.constant 0 : i32
    return %c0_i32, %c0_i32_0 : i32, i32
  }
  func.func @transform_5(%arg0: i32) -> (i32, i32) {
    %c0_i32 = arith.constant 0 : i32
    %c0_i32_0 = arith.constant 0 : i32
    return %arg0, %c0_i32 : i32, i32
  }
}

</mosaic_0001>

<llo_original>
// kernel: tpu_custom_call.1
$region0: #{tpu_custom_call.1}
  #allocation0 [shape = 'u32[]', space=smem, size = 0x4, offset = 0x4, fixed_abs, tag = 'smem constant byte address 0x4 - core index']
  #allocation1 [shape = 'u32[144,128]{1,0:T(1,128)}', space=vmem, size = 0x12000, scoped, tag = 'internal scratch']
  #allocation2 [shape = 'f32[1,1]{1,0:T(1,128)S(1)}', space=vmem, size = 0x200, scoped, tag = 'scoped memory for tpu_custom_call.1']
  %s0 = inlined_call_operand.hbm [shape: f32[8,128], index: 0, kind: input, shape index: {}]
  %s1 = inlined_call_operand.hbm [shape: f32[128,128], index: 1, kind: input, shape index: {}]
  %s2 = inlined_call_operand.vmem [shape: f32[1,128], index: 2, kind: input, shape index: {}]
  %s3 = inlined_call_operand.vmem [shape: f32[1,128], index: 3, kind: input, shape index: {}]
  %s4 = inlined_call_operand.<no memory space> [shape: f32[1,1], index: 4, kind: input, shape index: {}]
  %s5 = inlined_call_operand.vmem [shape: f32[8,1], index: 5, kind: output, shape index: {}]
  %s6 = sld [smem:[#allocation0]]
  $region38: #{tpu_custom_call.1} parent=0
    _
  %s8 = ssub.s32 1, %s6
  %s9 = scalar_select 0, %s8, %s6
  %v10 = vstv %s4
  %11 = vst [vmem:[#allocation2] sm:$0x1] %v10
  $region1: #{tpu_custom_call.1} parent=0
    #allocation3 [shape = 'u8[4096]{0}', space=vmem, size = 0x1000, scoped, tag = 'input window, operand 0, single buffered']
    #allocation4 [shape = 's32[1]{0}', space=sflag, size = 0x4, scoped, tag = 'scoped memory for tpu_custom_call.1']
    #allocation5 [shape = 'u8[65536]{0}', space=vmem, size = 0x10000, scoped, tag = 'input window, operand 1, single buffered']
    #allocation6 [shape = 's32[1]{0}', space=sflag, size = 0x4, scoped, tag = 'scoped memory for tpu_custom_call.1']
    %12 = vsyncpa [#allocation4], 0
    %13 = vsyncpa [#allocation6], 0
    // Predicated region
    $region2: #{tpu_custom_call.1} parent=1 // pred_check
      _
    $region3: #{tpu_custom_call.1} parent=1 // pred_check_branch
      %15 = sbr.rel (0) target = $region5
    $region4: #{tpu_custom_call.1} parent=1 // pred_region
      %s17 = ssub.s32 128, 128
      %18 = vsyncadd [#allocation4], %s17
      %s20 = sshll.u32 [#allocation3], 4
      %s21 = int_to_ptr.vmem [resolvable:$true] %s20
      %23 = dma.hbm_to_vmem [thread:$0]  %s0, 128, %s21, [#allocation4]
    $region5: #{tpu_custom_call.1} parent=1 // pred_fallthru
      _
    // Predicated region
    $region6: #{tpu_custom_call.1} parent=1 // pred_check
      _
    $region7: #{tpu_custom_call.1} parent=1 // pred_check_branch
      %25 = sbr.rel (0) target = $region9
    $region8: #{tpu_custom_call.1} parent=1 // pred_region
      %s27 = ssub.s32 2048, 2048
      %28 = vsyncadd [#allocation6], %s27
      %s29 = sshll.u32 [#allocation5], 4
      %s30 = int_to_ptr.vmem [resolvable:$true] %s29
      %35 = dma.hbm_to_vmem [thread:$0]  %s1, 2048, %s30, [#allocation6], 128, 128, 8
    $region9: #{tpu_custom_call.1} parent=1 // pred_fallthru
      _
    // Predicated region
    $region10: #{tpu_custom_call.1} parent=1 // pred_check
      _
    $region11: #{tpu_custom_call.1} parent=1 // pred_check_branch
      %37 = sbr.rel (0) target = $region13
    $region12: #{tpu_custom_call.1} parent=1 // pred_region
      _
    $region13: #{tpu_custom_call.1} parent=1 // pred_fallthru
      _
    // Predicated region
    $region14: #{tpu_custom_call.1} parent=1 // pred_check
      _
    $region15: #{tpu_custom_call.1} parent=1 // pred_check_branch
      %39 = sbr.rel (0) target = $region17
    $region16: #{tpu_custom_call.1} parent=1 // pred_region
      _
    $region17: #{tpu_custom_call.1} parent=1 // pred_fallthru
      _
    // Predicated region
    $region18: #{tpu_custom_call.1} parent=1 // pred_check
      _
    $region19: #{tpu_custom_call.1} parent=1 // pred_check_branch
      %41 = sbr.rel (0) target = $region21
    $region20: #{tpu_custom_call.1} parent=1 // pred_region
      _
    $region21: #{tpu_custom_call.1} parent=1 // pred_fallthru
      _
    // Predicated region
    $region22: #{tpu_custom_call.1} parent=1 // pred_check
      _
    $region23: #{tpu_custom_call.1} parent=1 // pred_check_branch
      %43 = sbr.rel (0) target = $region25
    $region24: #{tpu_custom_call.1} parent=1 // pred_region
      %44 = dma.done [#allocation4], 128
    $region25: #{tpu_custom_call.1} parent=1 // pred_fallthru
      _
    // Predicated region
    $region26: #{tpu_custom_call.1} parent=1 // pred_check
      _
    $region27: #{tpu_custom_call.1} parent=1 // pred_check_branch
      %46 = sbr.rel (0) target = $region29
    $region28: #{tpu_custom_call.1} parent=1 // pred_region
      %47 = dma.done [#allocation6], 2048
    $region29: #{tpu_custom_call.1} parent=1 // pred_fallthru
      _
    %v48 = vld [vmem:[#allocation3] sm:$0xff]
    %v49 = vld [vmem:[#allocation5] sm:$0xff]
    %v50 = vld [vmem:[#allocation5 + $0x8] sm:$0xff]
    %v51 = vld [vmem:[#allocation5 + $0x10] sm:$0xff]
    %v52 = vld [vmem:[#allocation5 + $0x18] sm:$0xff]
    %v53 = vld [vmem:[#allocation5 + $0x20] sm:$0xff]
    %v54 = vld [vmem:[#allocation5 + $0x28] sm:$0xff]
    %v55 = vld [vmem:[#allocation5 + $0x30] sm:$0xff]
    %v56 = vld [vmem:[#allocation5 + $0x38] sm:$0xff]
    %v57 = vld [vmem:[#allocation5 + $0x40] sm:$0xff]
    %v58 = vld [vmem:[#allocation5 + $0x48] sm:$0xff]
    %v59 = vld [vmem:[#allocation5 + $0x50] sm:$0xff]
    %v60 = vld [vmem:[#allocation5 + $0x58] sm:$0xff]
    %v61 = vld [vmem:[#allocation5 + $0x60] sm:$0xff]
    %v62 = vld [vmem:[#allocation5 + $0x68] sm:$0xff]
    %v63 = vld [vmem:[#allocation5 + $0x70] sm:$0xff]
    %v64 = vld [vmem:[#allocation5 + $0x78] sm:$0xff]
    %v65 = vld [vmem:[%s2] sm:$0x1]
    %v67 = vlaneseq
    %v68 = vshrl.u32 %v67, 7
    %v69 = vsub.s32 0, %v68
    %v70 = vrot.slane %v65, %v69
    %72 = vmatprep.subr.mxu0 0.0
    %73 = vmatpush1.msra.mxu0 %v64
    %74 = vmatprep.subr.mxu0 0.0
    %75 = vmatpush1.msra.mxu0 %v63
    %76 = vmatprep.subr.mxu0 0.0
    %77 = vmatpush1.msra.mxu0 %v62
    %78 = vmatprep.subr.mxu0 0.0
    %79 = vmatpush1.msra.mxu0 %v61
    %80 = vmatprep.subr.mxu0 0.0
    %81 = vmatpush1.msra.mxu0 %v60
    %82 = vmatprep.subr.mxu0 0.0
    %83 = vmatpush1.msra.mxu0 %v59
    %84 = vmatprep.subr.mxu0 0.0
    %85 = vmatpush1.msra.mxu0 %v58
    %86 = vmatprep.subr.mxu0 0.0
    %87 = vmatpush1.msra.mxu0 %v57
    %88 = vmatprep.subr.mxu0 0.0
    %89 = vmatpush1.msra.mxu0 %v56
    %90 = vmatprep.subr.mxu0 0.0
    %91 = vmatpush1.msra.mxu0 %v55
    %92 = vmatprep.subr.mxu0 0.0
    %93 = vmatpush1.msra.mxu0 %v54
    %94 = vmatprep.subr.mxu0 0.0
    %95 = vmatpush1.msra.mxu0 %v53
    %96 = vmatprep.subr.mxu0 0.0
    %97 = vmatpush1.msra.mxu0 %v52
    %98 = vmatprep.subr.mxu0 0.0
    %99 = vmatpush1.msra.mxu0 %v51
    %100 = vmatprep.subr.mxu0 0.0
    %101 = vmatpush1.msra.mxu0 %v50
    %102 = vmatprep.subr.mxu0 0.0
    %103 = vmatpush1.msra.mxu0 %v49
    %104 = vmatprep.subr.mxu0 0.0
    %105 = vmatpush2.msra.mxu0 0.0
    %106 = vmatprep.subr.mxu0 0.0
    %107 = vmatpush2.msra.mxu0 0.0
    %108 = vmatprep.subr.mxu0 0.0
    %109 = vmatpush2.msra.mxu0 0.0
    %110 = vmatprep.subr.mxu0 0.0
    %111 = vmatpush2.msra.mxu0 0.0
    %112 = vmatprep.subr.mxu0 0.0
    %113 = vmatpush2.msra.mxu0 0.0
    %114 = vmatprep.subr.mxu0 0.0
    %115 = vmatpush2.msra.mxu0 0.0
    %116 = vmatprep.subr.mxu0 0.0
    %117 = vmatpush2.msra.mxu0 0.0
    %118 = vmatprep.subr.mxu0 0.0
    %119 = vmatpush2.msra.mxu0 0.0
    %120 = vmatprep.subr.mxu0 0.0
    %121 = vmatpush2.msra.mxu0 0.0
    %122 = vmatprep.subr.mxu0 0.0
    %123 = vmatpush2.msra.mxu0 0.0
    %124 = vmatprep.subr.mxu0 0.0
    %125 = vmatpush2.msra.mxu0 0.0
    %126 = vmatprep.subr.mxu0 0.0
    %127 = vmatpush2.msra.mxu0 0.0
    %128 = vmatprep.subr.mxu0 0.0
    %129 = vmatpush2.msra.mxu0 0.0
    %130 = vmatprep.subr.mxu0 0.0
    %131 = vmatpush2.msra.mxu0 0.0
    %132 = vmatprep.subr.mxu0 0.0
    %133 = vmatpush2.msra.mxu0 0.0
    %134 = vmatprep.subr.mxu0 0.0
    %135 = vmatpush2.msra.mxu0 0.0
    %136 = vmatprep.mubr.f32.mxu0 0.0
    %137 = vmatmul.mubr.f32.gmra.mxu0 %v48
    %v138 = vpop.f32.mrf.mxu0
    %v139 = vadd.f32 %v70, %v138
    %v140 = vpop.f32.mrf.mxu0
    %141 = vdwg.mxu0
    %v142 = vtanh.pop %v139
    %v143 = vld [vmem:[%s3] sm:$0x1]
    %v145 = vlaneseq
    %v146 = vshrl.u32 %v145, 7
    %v147 = vsub.s32 0, %v146
    %v148 = vrot.slane %v143, %v147
    %v150 = vmul.f32 %v142, %v148
    %151 = vadd.xlane.f32.xlu0 %v150
    %v152 = vpop.xlane.xlu0 %151
    %v153 = vld [vmem:[#allocation2] sm:$0x1]
    %v155 = vlaneseq
    %v156 = vshrl.u32 %v155, 7
    %v157 = vsub.s32 0, %v156
    %v158 = vrot.slane %v153, %v157
    %v160 = vadd.f32 %v152, %v158
    %vm161 = vcmask 7168
    %162 = vst.msk [vmem:[%s5] sm:$0xff] %vm161, %v160
    // Predicated region
    $region30: #{tpu_custom_call.1} parent=1 // pred_check
      _
    $region31: #{tpu_custom_call.1} parent=1 // pred_check_branch
      %164 = sbr.rel (0) target = $region33
    $region32: #{tpu_custom_call.1} parent=1 // pred_region
      _
    $region33: #{tpu_custom_call.1} parent=1 // pred_fallthru
      _
    // Predicated region
    $region34: #{tpu_custom_call.1} parent=1 // pred_check
      _
    $region35: #{tpu_custom_call.1} parent=1 // pred_check_branch
      %166 = sbr.rel (0) target = $region37
    $region36: #{tpu_custom_call.1} parent=1 // pred_region
      _
    $region37: #{tpu_custom_call.1} parent=1 // pred_fallthru
      _
    %167 = vsyncpa [#allocation4], 1
    %168 = vsyncpa [#allocation6], 1

</llo_original>
